<compile_context>
chip_gen: v6e
topology: v6e:2x2x1
jax: 0.10.0
libtpu: 0.0.40
codegen_flags: <defaults>
</compile_context>

<pallas_src>
import functools

import jax
import jax.numpy as jnp
from jax import lax
from jax.experimental import pallas as pl
from jax.experimental.pallas import tpu as pltpu


def _round_up(x, m):
    return ((x + m - 1) // m) * m


def mlp_logsoftmax_kernel(x_ref, w1_ref, b1_ref, w2_ref, b2_ref, o_ref, *, d_out):
    """Fused:  h = x@W1+b1 ; z = h@W2+b2 ; out = log_softmax(z[:, :d_out])."""
    x = x_ref[...]
    # Layer 1 (Linear): MXU matmul with f32 accumulation + bias broadcast.
    h = jnp.dot(x, w1_ref[...], preferred_element_type=jnp.float32) + b1_ref[...]
    # Layer 2 (Linear), output lane-padded to a multiple of 128.
    z = jnp.dot(h, w2_ref[...], preferred_element_type=jnp.float32) + b2_ref[...]
    # Mask padded columns with -inf so they don't affect max / sum-exp.
    col = lax.broadcasted_iota(jnp.int32, z.shape, 1)
    z = jnp.where(col < d_out, z, jnp.float32(-jnp.inf))
    # log_softmax over dim=1 (numerically stable).
    m = jnp.max(z, axis=1, keepdims=True)
    s = z - m
    lse = jnp.log(jnp.sum(jnp.exp(s), axis=1, keepdims=True))
    o_ref[...] = (s - lse).astype(o_ref.dtype)


@functools.partial(jax.jit, static_argnames=("sizes",))
def network_forward(a, w1, b1, w2, b2, *, sizes):
    """Pallas equivalent of Network([in, hid, out]).forward(a).

    a  : any shape whose trailing dims flatten to sizes[0]  (e.g. NCHW image)
    w1 : (sizes[0], sizes[1])   (already transposed vs. torch's (out, in))
    b1 : (1, sizes[1])
    w2 : (sizes[1], sizes[2])
    b2 : (1, sizes[2])
    returns (B, sizes[2]) log-probabilities.
    """
    d_in, d_hid, d_out = sizes
    x = a.reshape(-1, d_in)              # a.view(-1, sizes[0])
    batch = x.shape[0]

    # --- batch tiling (sublane-aligned); weights stay resident across steps ---
    TM = min(128, _round_up(batch, 8))
    batch_pad = _round_up(batch, TM)
    if batch_pad != batch:
        x = jnp.pad(x, ((0, batch_pad - batch), (0, 0)))

    # --- lane-dense output: pad logits dim to a multiple of 128 ---
    d_out_pad = _round_up(d_out, 128)
    if d_out_pad != d_out:
        w2 = jnp.pad(w2, ((0, 0), (0, d_out_pad - d_out)))
        b2 = jnp.pad(b2, ((0, 0), (0, d_out_pad - d_out)))

    grid = (batch_pad // TM,)

    kernel = functools.partial(mlp_logsoftmax_kernel, d_out=d_out)

    # Advisory cost estimate for XLA's scheduler.
    cost = pl.CostEstimate(
        flops=2 * batch_pad * (d_in * d_hid + d_hid * d_out_pad),
        transcendentals=batch_pad * (d_out_pad + 1),
        bytes_accessed=4 * (batch_pad * d_in + d_in * d_hid + d_hid
                            + d_hid * d_out_pad + d_out_pad
                            + batch_pad * d_out_pad),
    )

    # VMEM budget: double-buffered x/out tiles + resident weights, with margin.
    # Clamped so it is valid on every generation (incl. v7x's 64 MiB VMEM).
    vmem_need = 4 * (2 * TM * d_in + 2 * TM * d_out_pad
                     + 2 * (d_in * d_hid + d_hid + d_hid * d_out_pad + d_out_pad))
    vmem_limit = min(64 * 1024 * 1024, max(4 * vmem_need, 16 * 1024 * 1024))

    out = pl.pallas_call(
        kernel,
        out_shape=jax.ShapeDtypeStruct((batch_pad, d_out_pad), jnp.float32),
        grid=grid,
        in_specs=[
            pl.BlockSpec((TM, d_in), lambda i: (i, 0)),        # x tile moves
            pl.BlockSpec((d_in, d_hid), lambda i: (0, 0)),     # W1 resident
            pl.BlockSpec((1, d_hid), lambda i: (0, 0)),        # b1 resident
            pl.BlockSpec((d_hid, d_out_pad), lambda i: (0, 0)),  # W2 resident
            pl.BlockSpec((1, d_out_pad), lambda i: (0, 0)),    # b2 resident
        ],
        out_specs=pl.BlockSpec((TM, d_out_pad), lambda i: (i, 0)),
        compiler_params=pltpu.CompilerParams(
            dimension_semantics=("parallel",),
            vmem_limit_bytes=vmem_limit,
        ),
        cost_estimate=cost,
    )(x, w1, b1, w2, b2)

    return out[:batch, :d_out]


def init_params(key, sizes):
    """Deterministic PyTorch-style Linear init: U(-1/sqrt(fan_in), 1/sqrt(fan_in))."""
    d_in, d_hid, d_out = sizes
    k1, k2, k3, k4 = jax.random.split(key, 4)
    bound1 = 1.0 / jnp.sqrt(d_in)
    bound2 = 1.0 / jnp.sqrt(d_hid)
    # Stored pre-transposed as (in, out) for the kernel.
    w1 = jax.random.uniform(k1, (d_in, d_hid), jnp.float32, -bound1, bound1)
    b1 = jax.random.uniform(k2, (1, d_hid), jnp.float32, -bound1, bound1)
    w2 = jax.random.uniform(k3, (d_hid, d_out), jnp.float32, -bound2, bound2)
    b2 = jax.random.uniform(k4, (1, d_out), jnp.float32, -bound2, bound2)
    return w1, b1, w2, b2


def reference_forward(a, w1, b1, w2, b2, sizes):
    x = a.reshape(-1, sizes[0])
    h = x @ w1 + b1
    z = h @ w2 + b2
    return jax.nn.log_softmax(z, axis=1)


if __name__ == "__main__":
    # Small shapes consistent with the module: sizes=[256, 32, 16],
    # input images of shape (B=2, C=1, H=16, W=16) -> flattened to (2, 256).
    sizes = (256, 32, 16)
    key = jax.random.PRNGKey(0)
    k_x, k_p = jax.random.split(key)
    x = jax.random.normal(k_x, (2, 1, 16, 16), dtype=jnp.float32)
    w1, b1, w2, b2 = init_params(k_p, sizes)

    out = network_forward(x, w1, b1, w2, b2, sizes=sizes)
    out = jax.block_until_ready(out)

    ref = reference_forward(x, w1, b1, w2, b2, sizes)
    assert out.shape == (2, sizes[2])
    assert jnp.allclose(out, ref, atol=1e-5, rtol=1e-5), "mismatch vs reference"

    print("KERNEL_OK")
</pallas_src>

<mosaic_0001>
module attributes {stable_mosaic.version = 11 : i64} {
  func.func @mlp_logsoftmax_kernel(%arg0: i32, %arg1: memref<8x256xf32, #tpu.memory_space<vmem>>, %arg2: memref<256x32xf32, #tpu.memory_space<vmem>>, %arg3: memref<1x32xf32, #tpu.memory_space<vmem>>, %arg4: memref<32x128xf32, #tpu.memory_space<vmem>>, %arg5: memref<1x128xf32, #tpu.memory_space<vmem>>, %arg6: memref<8x128xf32, #tpu.memory_space<vmem>>) attributes {dimension_semantics = [#tpu.dimension_semantics<parallel>], iteration_bounds = array<i64: 1>, scalar_prefetch = 0 : i64, scratch_operands = 0 : i64, tpu.core_type = #tpu.core_type<tc>, window_params = [{transform_indices = @transform_0, window_bounds = array<i64: 8, 256>}, {pipeline_mode = #tpu.pipeline_mode<synchronous>, transform_indices = @transform_1, window_bounds = array<i64: 256, 32>}, {pipeline_mode = #tpu.pipeline_mode<synchronous>, transform_indices = @transform_2, window_bounds = array<i64: 1, 32>}, {pipeline_mode = #tpu.pipeline_mode<synchronous>, transform_indices = @transform_3, window_bounds = array<i64: 32, 128>}, {pipeline_mode = #tpu.pipeline_mode<synchronous>, transform_indices = @transform_4, window_bounds = array<i64: 1, 128>}, {transform_indices = @transform_5, window_bounds = array<i64: 8, 128>}]} {
    %c0 = arith.constant 0 : index
    %c0_0 = arith.constant 0 : index
    %0 = vector.load %arg1[%c0, %c0_0] : memref<8x256xf32, #tpu.memory_space<vmem>>, vector<8x256xf32>
    %c0_1 = arith.constant 0 : index
    %c0_2 = arith.constant 0 : index
    %1 = vector.load %arg2[%c0_1, %c0_2] : memref<256x32xf32, #tpu.memory_space<vmem>>, vector<256x32xf32>
    %cst = arith.constant dense<0.000000e+00> : vector<8x32xf32>
    %2 = tpu.matmul %0, %1, %cst {dimension_numbers = #tpu.dot_dimension_numbers<[1], [0], [0], [1], [0, 0, 1, 1], [], []>} : vector<8x256xf32>, vector<256x32xf32>, vector<8x32xf32> -> vector<8x32xf32>
    %c0_3 = arith.constant 0 : index
    %c0_4 = arith.constant 0 : index
    %3 = vector.load %arg3[%c0_3, %c0_4] : memref<1x32xf32, #tpu.memory_space<vmem>>, vector<1x32xf32>
    %4 = vector.broadcast %3 : vector<1x32xf32> to vector<8x32xf32>
    %5 = arith.addf %2, %4 : vector<8x32xf32>
    %c0_5 = arith.constant 0 : index
    %c0_6 = arith.constant 0 : index
    %6 = vector.load %arg4[%c0_5, %c0_6] : memref<32x128xf32, #tpu.memory_space<vmem>>, vector<32x128xf32>
    %cst_7 = arith.constant dense<0.000000e+00> : vector<8x128xf32>
    %7 = tpu.matmul %5, %6, %cst_7 {dimension_numbers = #tpu.dot_dimension_numbers<[1], [0], [0], [1], [0, 0, 1, 1], [], []>} : vector<8x32xf32>, vector<32x128xf32>, vector<8x128xf32> -> vector<8x128xf32>
    %c0_8 = arith.constant 0 : index
    %c0_9 = arith.constant 0 : index
    %8 = vector.load %arg5[%c0_8, %c0_9] : memref<1x128xf32, #tpu.memory_space<vmem>>, vector<1x128xf32>
    %9 = vector.broadcast %8 : vector<1x128xf32> to vector<8x128xf32>
    %10 = arith.addf %7, %9 : vector<8x128xf32>
    %11 = tpu.iota {dimensions = array<i32: 1>} : vector<8x128xi32>
    %c16_i32 = arith.constant 16 : i32
    %12 = vector.broadcast %c16_i32 : i32 to vector<8x128xi32>
    %13 = arith.cmpi slt, %11, %12 : vector<8x128xi32>
    %cst_10 = arith.constant 0xFF800000 : f32
    %14 = vector.broadcast %cst_10 : f32 to vector<8x128xf32>
    %15 = arith.select %13, %10, %14 : vector<8x128xi1>, vector<8x128xf32>
    %cst_11 = arith.constant dense<0xFF800000> : vector<8xf32>
    %16 = vector.multi_reduction <maximumf>, %15, %cst_11 [1] : vector<8x128xf32> to vector<8xf32>
    %17 = vector.shape_cast %16 : vector<8xf32> to vector<8x1xf32>
    %18 = vector.broadcast %17 : vector<8x1xf32> to vector<8x128xf32>
    %19 = arith.subf %15, %18 : vector<8x128xf32>
    %20 = math.exp %19 : vector<8x128xf32>
    %cst_12 = arith.constant dense<0.000000e+00> : vector<8xf32>
    %21 = vector.multi_reduction <add>, %20, %cst_12 [1] : vector<8x128xf32> to vector<8xf32>
    %22 = vector.shape_cast %21 : vector<8xf32> to vector<8x1xf32>
    %23 = math.log %22 : vector<8x1xf32>
    %24 = vector.broadcast %23 : vector<8x1xf32> to vector<8x128xf32>
    %25 = arith.subf %19, %24 : vector<8x128xf32>
    %c0_13 = arith.constant 0 : index
    %c0_14 = arith.constant 0 : index
    %26 = vector.load %arg6[%c0_13, %c0_14] : memref<8x128xf32, #tpu.memory_space<vmem>>, vector<8x128xf32>
    tpu.vector_store %arg6[%c0_13, %c0_14], %25 {strides = array<i32>} : memref<8x128xf32, #tpu.memory_space<vmem>>, vector<8x128xf32>,
    return
  }
  func.func @transform_0(%arg0: i32) -> (i32, i32) {
    %c0_i32 = arith.constant 0 : i32
    %c0_i32_0 = arith.constant 0 : i32
    return %arg0, %c0_i32 : i32, i32
  }
  func.func @transform_1(%arg0: i32) -> (i32, i32) {
    %c0_i32 = arith.constant 0 : i32
    %c0_i32_0 = arith.constant 0 : i32
    %c0_i32_1 = arith.constant 0 : i32
    return %c0_i32, %c0_i32_0 : i32, i32
  }
  func.func @transform_2(%arg0: i32) -> (i32, i32) {
    %c0_i32 = arith.constant 0 : i32
    %c0_i32_0 = arith.constant 0 : i32
    %c0_i32_1 = arith.constant 0 : i32
    return %c0_i32, %c0_i32_0 : i32, i32
  }
  func.func @transform_3(%arg0: i32) -> (i32, i32) {
    %c0_i32 = arith.constant 0 : i32
    %c0_i32_0 = arith.constant 0 : i32
    %c0_i32_1 = arith.constant 0 : i32
    return %c0_i32, %c0_i32_0 : i32, i32
  }
  func.func @transform_4(%arg0: i32) -> (i32, i32) {
    %c0_i32 = arith.constant 0 : i32
    %c0_i32_0 = arith.constant 0 : i32
    %c0_i32_1 = arith.constant 0 : i32
    return %c0_i32, %c0_i32_0 : i32, i32
  }
  func.func @transform_5(%arg0: i32) -> (i32, i32) {
    %c0_i32 = arith.constant 0 : i32
    %c0_i32_0 = arith.constant 0 : i32
    return %arg0, %c0_i32 : i32, i32
  }
}

</mosaic_0001>

<llo_original>
// kernel: network_forward.1
$region0: #{network_forward.1}
  #allocation0 [shape = 'u32[]', space=smem, size = 0x4, offset = 0x4, fixed_abs, tag = 'smem constant byte address 0x4 - core index']
  #allocation1 [shape = 'u32[144,128]{1,0:T(1,128)}', space=vmem, size = 0x12000, scoped, tag = 'internal scratch']
  %s0 = inlined_call_operand.vmem [shape: f32[8,256], index: 0, kind: input, shape index: {}]
  %s1 = inlined_call_operand.vmem [shape: f32[256,32], index: 1, kind: input, shape index: {}]
  %s2 = inlined_call_operand.vmem [shape: f32[1,32], index: 2, kind: input, shape index: {}]
  %s3 = inlined_call_operand.vmem [shape: f32[32,128], index: 3, kind: input, shape index: {}]
  %s4 = inlined_call_operand.vmem [shape: f32[1,128], index: 4, kind: input, shape index: {}]
  %s5 = inlined_call_operand.vmem [shape: f32[8,128], index: 5, kind: output, shape index: {}]
  %s6 = sld [smem:[#allocation0]]
  $region30: #{network_forward.1} parent=0
    _
  %s8 = ssub.s32 1, %s6
  %s9 = scalar_select 0, %s8, %s6
  // Predicated region
  $region2: #{network_forward.1} parent=0 // pred_check
    _
  $region3: #{network_forward.1} parent=0 // pred_check_branch
    %11 = sbr.rel (0) target = $region5
  $region4: #{network_forward.1} parent=0 // pred_region
    _
  $region5: #{network_forward.1} parent=0 // pred_fallthru
    _
  // Predicated region
  $region6: #{network_forward.1} parent=0 // pred_check
    _
  $region7: #{network_forward.1} parent=0 // pred_check_branch
    %13 = sbr.rel (0) target = $region9
  $region8: #{network_forward.1} parent=0 // pred_region
    _
  $region9: #{network_forward.1} parent=0 // pred_fallthru
    _
  // Predicated region
  $region10: #{network_forward.1} parent=0 // pred_check
    _
  $region11: #{network_forward.1} parent=0 // pred_check_branch
    %15 = sbr.rel (0) target = $region13
  $region12: #{network_forward.1} parent=0 // pred_region
    _
  $region13: #{network_forward.1} parent=0 // pred_fallthru
    _
  // Predicated region
  $region14: #{network_forward.1} parent=0 // pred_check
    _
  $region15: #{network_forward.1} parent=0 // pred_check_branch
    %17 = sbr.rel (0) target = $region17
  $region16: #{network_forward.1} parent=0 // pred_region
    _
  $region17: #{network_forward.1} parent=0 // pred_fallthru
    _
  // Predicated region
  $region18: #{network_forward.1} parent=0 // pred_check
    _
  $region19: #{network_forward.1} parent=0 // pred_check_branch
    %19 = sbr.rel (0) target = $region21
  $region20: #{network_forward.1} parent=0 // pred_region
    _
  $region21: #{network_forward.1} parent=0 // pred_fallthru
    _
  %v20 = vld [vmem:[%s0] sm:$0xff]
  %v21 = vld [vmem:[%s0 + $0x8] sm:$0xff]
  %v22 = vld [vmem:[%s1] sm:$0xff]
  %v23 = vld [vmem:[%s1 + $0x8] sm:$0xff]
  %v24 = vld [vmem:[%s1 + $0x10] sm:$0xff]
  %v25 = vld [vmem:[%s1 + $0x18] sm:$0xff]
  %v26 = vld [vmem:[%s1 + $0x20] sm:$0xff]
  %v27 = vld [vmem:[%s1 + $0x28] sm:$0xff]
  %v28 = vld [vmem:[%s1 + $0x30] sm:$0xff]
  %v29 = vld [vmem:[%s1 + $0x38] sm:$0xff]
  %v30 = vld [vmem:[%s1 + $0x40] sm:$0xff]
  %v31 = vld [vmem:[%s1 + $0x48] sm:$0xff]
  %v32 = vld [vmem:[%s1 + $0x50] sm:$0xff]
  %v33 = vld [vmem:[%s1 + $0x58] sm:$0xff]
  %v34 = vld [vmem:[%s1 + $0x60] sm:$0xff]
  %v35 = vld [vmem:[%s1 + $0x68] sm:$0xff]
  %v36 = vld [vmem:[%s1 + $0x70] sm:$0xff]
  %v37 = vld [vmem:[%s1 + $0x78] sm:$0xff]
  %v38 = vld [vmem:[%s1 + $0x80] sm:$0xff]
  %v39 = vld [vmem:[%s1 + $0x88] sm:$0xff]
  %v40 = vld [vmem:[%s1 + $0x90] sm:$0xff]
  %v41 = vld [vmem:[%s1 + $0x98] sm:$0xff]
  %v42 = vld [vmem:[%s1 + $0xa0] sm:$0xff]
  %v43 = vld [vmem:[%s1 + $0xa8] sm:$0xff]
  %v44 = vld [vmem:[%s1 + $0xb0] sm:$0xff]
  %v45 = vld [vmem:[%s1 + $0xb8] sm:$0xff]
  %v46 = vld [vmem:[%s1 + $0xc0] sm:$0xff]
  %v47 = vld [vmem:[%s1 + $0xc8] sm:$0xff]
  %v48 = vld [vmem:[%s1 + $0xd0] sm:$0xff]
  %v49 = vld [vmem:[%s1 + $0xd8] sm:$0xff]
  %v50 = vld [vmem:[%s1 + $0xe0] sm:$0xff]
  %v51 = vld [vmem:[%s1 + $0xe8] sm:$0xff]
  %v52 = vld [vmem:[%s1 + $0xf0] sm:$0xff]
  %v53 = vld [vmem:[%s1 + $0xf8] sm:$0xff]
  %v54 = vld [vmem:[%s2] sm:$0x1]
  %v56 = vlaneseq
  %v57 = vshrl.u32 %v56, 7
  %v58 = vsub.s32 0, %v57
  %v59 = vrot.slane %v54, %v58
  %61 = vmatprep.subr.mxu0 0.0
  %62 = vmatpush1.msra.mxu0 %v37
  %63 = vmatprep.subr.mxu0 0.0
  %64 = vmatpush1.msra.mxu0 %v36
  %65 = vmatprep.subr.mxu0 0.0
  %66 = vmatpush1.msra.mxu0 %v35
  %67 = vmatprep.subr.mxu0 0.0
  %68 = vmatpush1.msra.mxu0 %v34
  %69 = vmatprep.subr.mxu0 0.0
  %70 = vmatpush1.msra.mxu0 %v33
  %71 = vmatprep.subr.mxu0 0.0
  %72 = vmatpush1.msra.mxu0 %v32
  %73 = vmatprep.subr.mxu0 0.0
  %74 = vmatpush1.msra.mxu0 %v31
  %75 = vmatprep.subr.mxu0 0.0
  %76 = vmatpush1.msra.mxu0 %v30
  %77 = vmatprep.subr.mxu0 0.0
  %78 = vmatpush1.msra.mxu0 %v29
  %79 = vmatprep.subr.mxu0 0.0
  %80 = vmatpush1.msra.mxu0 %v28
  %81 = vmatprep.subr.mxu0 0.0
  %82 = vmatpush1.msra.mxu0 %v27
  %83 = vmatprep.subr.mxu0 0.0
  %84 = vmatpush1.msra.mxu0 %v26
  %85 = vmatprep.subr.mxu0 0.0
  %86 = vmatpush1.msra.mxu0 %v25
  %87 = vmatprep.subr.mxu0 0.0
  %88 = vmatpush1.msra.mxu0 %v24
  %89 = vmatprep.subr.mxu0 0.0
  %90 = vmatpush1.msra.mxu0 %v23
  %91 = vmatprep.subr.mxu0 0.0
  %92 = vmatpush1.msra.mxu0 %v22
  %93 = vmatprep.subr.mxu0 0.0
  %94 = vmatpush2.msra.mxu0 %v53
  %95 = vmatprep.subr.mxu0 0.0
  %96 = vmatpush2.msra.mxu0 %v52
  %97 = vmatprep.subr.mxu0 0.0
  %98 = vmatpush2.msra.mxu0 %v51
  %99 = vmatprep.subr.mxu0 0.0
  %100 = vmatpush2.msra.mxu0 %v50
  %101 = vmatprep.subr.mxu0 0.0
  %102 = vmatpush2.msra.mxu0 %v49
  %103 = vmatprep.subr.mxu0 0.0
  %104 = vmatpush2.msra.mxu0 %v48
  %105 = vmatprep.subr.mxu0 0.0
  %106 = vmatpush2.msra.mxu0 %v47
  %107 = vmatprep.subr.mxu0 0.0
  %108 = vmatpush2.msra.mxu0 %v46
  %109 = vmatprep.subr.mxu0 0.0
  %110 = vmatpush2.msra.mxu0 %v45
  %111 = vmatprep.subr.mxu0 0.0
  %112 = vmatpush2.msra.mxu0 %v44
  %113 = vmatprep.subr.mxu0 0.0
  %114 = vmatpush2.msra.mxu0 %v43
  %115 = vmatprep.subr.mxu0 0.0
  %116 = vmatpush2.msra.mxu0 %v42
  %117 = vmatprep.subr.mxu0 0.0
  %118 = vmatpush2.msra.mxu0 %v41
  %119 = vmatprep.subr.mxu0 0.0
  %120 = vmatpush2.msra.mxu0 %v40
  %121 = vmatprep.subr.mxu0 0.0
  %122 = vmatpush2.msra.mxu0 %v39
  %123 = vmatprep.subr.mxu0 0.0
  %124 = vmatpush2.msra.mxu0 %v38
  %125 = vmatprep.mubr.f32.mxu0 %v21
  %126 = vmatmul.mubr.f32.gmra.mxu0 %v20
  %v127 = vpop.f32.mrf.mxu0
  %v128 = vadd.f32 %v59, %v127
  %v129 = vpop.f32.mrf.mxu0
  %130 = vdwg.mxu0
  %v131 = vld [vmem:[%s3] sm:$0xff]
  %v132 = vld [vmem:[%s3 + $0x8] sm:$0xff]
  %v133 = vld [vmem:[%s3 + $0x10] sm:$0xff]
  %v134 = vld [vmem:[%s3 + $0x18] sm:$0xff]
  %v135 = vld [vmem:[%s4] sm:$0x1]
  %v137 = vlaneseq
  %v138 = vshrl.u32 %v137, 7
  %v139 = vsub.s32 0, %v138
  %v140 = vrot.slane %v135, %v139
  %vm142 = vcmask 261120
  %v144 = vsel %vm142, %v128, 0
  %146 = vmatprep.subr.mxu0 0.0
  %147 = vmatpush1.msra.mxu0 0.0
  %148 = vmatprep.subr.mxu0 0.0
  %149 = vmatpush1.msra.mxu0 0.0
  %150 = vmatprep.subr.mxu0 0.0
  %151 = vmatpush1.msra.mxu0 0.0
  %152 = vmatprep.subr.mxu0 0.0
  %153 = vmatpush1.msra.mxu0 0.0
  %154 = vmatprep.subr.mxu0 0.0
  %155 = vmatpush1.msra.mxu0 0.0
  %156 = vmatprep.subr.mxu0 0.0
  %157 = vmatpush1.msra.mxu0 0.0
  %158 = vmatprep.subr.mxu0 0.0
  %159 = vmatpush1.msra.mxu0 0.0
  %160 = vmatprep.subr.mxu0 0.0
  %161 = vmatpush1.msra.mxu0 0.0
  %162 = vmatprep.subr.mxu0 0.0
  %163 = vmatpush1.msra.mxu0 0.0
  %164 = vmatprep.subr.mxu0 0.0
  %165 = vmatpush1.msra.mxu0 0.0
  %166 = vmatprep.subr.mxu0 0.0
  %167 = vmatpush1.msra.mxu0 0.0
  %168 = vmatprep.subr.mxu0 0.0
  %169 = vmatpush1.msra.mxu0 0.0
  %170 = vmatprep.subr.mxu0 0.0
  %171 = vmatpush1.msra.mxu0 %v134
  %172 = vmatprep.subr.mxu0 0.0
  %173 = vmatpush1.msra.mxu0 %v133
  %174 = vmatprep.subr.mxu0 0.0
  %175 = vmatpush1.msra.mxu0 %v132
  %176 = vmatprep.subr.mxu0 0.0
  %177 = vmatpush1.msra.mxu0 %v131
  %178 = vmatprep.subr.mxu0 0.0
  %179 = vmatpush2.msra.mxu0 0.0
  %180 = vmatprep.subr.mxu0 0.0
  %181 = vmatpush2.msra.mxu0 0.0
  %182 = vmatprep.subr.mxu0 0.0
  %183 = vmatpush2.msra.mxu0 0.0
  %184 = vmatprep.subr.mxu0 0.0
  %185 = vmatpush2.msra.mxu0 0.0
  %186 = vmatprep.subr.mxu0 0.0
  %187 = vmatpush2.msra.mxu0 0.0
  %188 = vmatprep.subr.mxu0 0.0
  %189 = vmatpush2.msra.mxu0 0.0
  %190 = vmatprep.subr.mxu0 0.0
  %191 = vmatpush2.msra.mxu0 0.0
  %192 = vmatprep.subr.mxu0 0.0
  %193 = vmatpush2.msra.mxu0 0.0
  %194 = vmatprep.subr.mxu0 0.0
  %195 = vmatpush2.msra.mxu0 0.0
  %196 = vmatprep.subr.mxu0 0.0
  %197 = vmatpush2.msra.mxu0 0.0
  %198 = vmatprep.subr.mxu0 0.0
  %199 = vmatpush2.msra.mxu0 0.0
  %200 = vmatprep.subr.mxu0 0.0
  %201 = vmatpush2.msra.mxu0 0.0
  %202 = vmatprep.subr.mxu0 0.0
  %203 = vmatpush2.msra.mxu0 0.0
  %204 = vmatprep.subr.mxu0 0.0
  %205 = vmatpush2.msra.mxu0 0.0
  %206 = vmatprep.subr.mxu0 0.0
  %207 = vmatpush2.msra.mxu0 0.0
  %208 = vmatprep.subr.mxu0 0.0
  %209 = vmatpush2.msra.mxu0 0.0
  %210 = vmatprep.mubr.f32.mxu0 0.0
  %211 = vmatmul.mubr.f32.gmra.mxu0 %v144
  %v212 = vpop.f32.mrf.mxu0
  %v213 = vadd.f32 %v140, %v212
  %v214 = vpop.f32.mrf.mxu0
  %215 = vdwg.mxu0
  %v216 = vlaneseq
  %v217 = vand.u32 %v216, 127
  %vm218 = vcmp.lt.s32.totalorder %v217, 16
  %v219 = vsel %vm218, %v213, -inf
  %220 = vmax.xlane.f32.xlu0 %v219
  %v221 = vpop.xlane.xlu0 %220
  %v222 = vsub.f32 %v219, %v221
  %v223 = vmul.f32 %v222, 1.442695
  %v224 = vpow.pop %v223
  %225 = vadd.xlane.f32.xlu0 %v224
  %v226 = vpop.xlane.xlu0 %225
  %v227 = vlog2.pop %v226
  %v228 = vmul.f32 %v227, 0.6931472
  %v229 = vsub.f32 %v222, %v228
  %230 = vst [vmem:[%s5] sm:$0xff] %v229
  // Predicated region
  $region22: #{network_forward.1} parent=0 // pred_check
    _
  $region23: #{network_forward.1} parent=0 // pred_check_branch
    %232 = sbr.rel (0) target = $region25
  $region24: #{network_forward.1} parent=0 // pred_region
    _
  $region25: #{network_forward.1} parent=0 // pred_fallthru
    _
  // Predicated region
  $region26: #{network_forward.1} parent=0 // pred_check
    _
  $region27: #{network_forward.1} parent=0 // pred_check_branch
    %234 = sbr.rel (0) target = $region29
  $region28: #{network_forward.1} parent=0 // pred_region
    _
  $region29: #{network_forward.1} parent=0 // pred_fallthru
    _

</llo_original>
